<compile_context>
chip_gen: v7x
topology: tpu7x:2x2x1
jax: 0.10.0
libtpu: 0.0.40
codegen_flags: <defaults>
</compile_context>

<pallas_src>
import functools

import jax
import jax.numpy as jnp
from jax.experimental import pallas as pl
from jax.experimental.pallas import tpu as pltpu


def _stacked_lstm_kernel(x_ref, h0_ref, c0_ref, w_ih_ref, w_hh_ref, out_ref):
    """Single invocation: static Python loop over layers.

    x_ref    : (B, input_size)        external input
    h0_ref   : (L, B, H)              initial hidden states
    c0_ref   : (L, B, H)              initial cell states
    w_ih_ref : (L, max(in,H), 4H)     per-layer w_ih^T, rows zero-padded for layer 0
    w_hh_ref : (L, H, 4H)             per-layer w_hh^T
    out_ref  : (B, 2*L*H)             [h_0 | ... | h_{L-1} | c_0 | ... | c_{L-1}]
    """
    num_layers, _, hidden = h0_ref.shape
    input_size = x_ref.shape[-1]
    pad_rows = w_ih_ref.shape[1]

    inp = x_ref[...]  # (B, input_size), f32
    hs_parts = []
    cs_parts = []

    for layer in range(num_layers):
        in_rows = input_size if layer == 0 else hidden
        w_ih_l = w_ih_ref[layer]                       # (pad_rows, 4H)
        if in_rows != pad_rows:
            # General-size path (input_size != rnn_size): drop the zero-padded rows.
            w_ih_l = w_ih_l[:in_rows, :]

        # Two small MXU dots; the add happens on the matmul result path (free-ish,
        # in-place accumulate on v7x's MRB).
        gates = (jnp.dot(inp, w_ih_l, preferred_element_type=jnp.float32)
                 + jnp.dot(h0_ref[layer], w_hh_ref[layer],
                           preferred_element_type=jnp.float32))

        # Full-tile activations over the whole (B, 4H) gates tile, then slice per gate.
        # PyTorch LSTMCell gate order: i, f, g, o.
        sig = jax.nn.sigmoid(gates)
        th = jnp.tanh(gates)
        i_g = sig[:, 0 * hidden:1 * hidden]
        f_g = sig[:, 1 * hidden:2 * hidden]
        g_g = th[:, 2 * hidden:3 * hidden]
        o_g = sig[:, 3 * hidden:4 * hidden]

        c_new = f_g * c0_ref[layer] + i_g * g_g
        h_new = o_g * jnp.tanh(c_new)

        hs_parts.append(h_new)
        cs_parts.append(c_new)
        inp = h_new  # dropout between layers is identity in eval mode

    # Single lane-dense store: (B, 2*L*H) = (8, 128) at the test sizes -> unmasked vst.
    out_ref[...] = jnp.concatenate(hs_parts + cs_parts, axis=-1).astype(out_ref.dtype)


@functools.partial(jax.jit, static_argnames=("num_layers", "rnn_size"))
def _stacked_lstm_forward(x, h_0, c_0, w_ih_stacked, w_hh_stacked, *,
                          num_layers, rnn_size):
    """x: (B, input_size), h_0/c_0: (L, B, H), weights stacked per layer."""
    batch = x.shape[0]
    hidden = rnn_size

    out = pl.pallas_call(
        _stacked_lstm_kernel,
        out_shape=jax.ShapeDtypeStruct((batch, 2 * num_layers * hidden), x.dtype),
        in_specs=[pl.BlockSpec(memory_space=pltpu.MemorySpace.VMEM)] * 5,
        out_specs=pl.BlockSpec(memory_space=pltpu.MemorySpace.VMEM),
    )(x, h_0, c_0, w_ih_stacked, w_hh_stacked)

    # Host-side layout plumbing back to the module's mandated (L, B, H) views.
    hs = out[:, :num_layers * hidden].reshape(batch, num_layers, hidden).transpose(1, 0, 2)
    cs = out[:, num_layers * hidden:].reshape(batch, num_layers, hidden).transpose(1, 0, 2)

    # torch returns (input, (hs, cs)) where input is the last layer's h
    # (no dropout applied after the last layer).
    return hs[-1], (hs, cs)


class StackedLSTMCellPallas:
    """JAX/Pallas port of baseline.pytorch.torchy.StackedLSTMCell (eval mode)."""

    def __init__(self, num_layers, input_size, rnn_size, dropout, key):
        del dropout  # eval-mode: identity between layers
        self.num_layers = num_layers
        self.input_size = input_size
        self.rnn_size = rnn_size
        pad_rows = max(input_size, rnn_size)

        bound = 1.0 / (rnn_size ** 0.5)
        self.w_ih = []  # per-layer, stored transposed: (in, 4H)  (kept for reference check)
        self.w_hh = []  # per-layer, stored transposed: (H, 4H)
        ih_blocks, hh_blocks = [], []
        in_sz = input_size
        for _ in range(num_layers):
            key, k1, k2 = jax.random.split(key, 3)
            w_ih_t = jax.random.uniform(k1, (in_sz, 4 * rnn_size), jnp.float32, -bound, bound)
            w_hh_t = jax.random.uniform(k2, (rnn_size, 4 * rnn_size), jnp.float32, -bound, bound)
            self.w_ih.append(w_ih_t)
            self.w_hh.append(w_hh_t)
            # Rows beyond the layer's real input size are zero (and sliced off in-kernel).
            blk = jnp.zeros((pad_rows, 4 * rnn_size), jnp.float32).at[:in_sz, :].set(w_ih_t)
            ih_blocks.append(blk)
            hh_blocks.append(w_hh_t)
            in_sz = rnn_size
        self.w_ih_stacked = jnp.stack(ih_blocks)  # (L, pad_rows, 4H)
        self.w_hh_stacked = jnp.stack(hh_blocks)  # (L, H, 4H)

    def __call__(self, x, hidden):
        h_0, c_0 = hidden  # (L, B, H) each
        return _stacked_lstm_forward(
            x, h_0, c_0, self.w_ih_stacked, self.w_hh_stacked,
            num_layers=self.num_layers, rnn_size=self.rnn_size)


def _reference_forward(model, x, hidden):
    """Pure-jnp reference (mirrors the PyTorch module, eval mode)."""
    h_0, c_0 = hidden
    hs, cs = [], []
    H = model.rnn_size
    for i in range(model.num_layers):
        gates = x @ model.w_ih[i] + h_0[i] @ model.w_hh[i]
        ig = jax.nn.sigmoid(gates[:, 0:H])
        fg = jax.nn.sigmoid(gates[:, H:2 * H])
        gg = jnp.tanh(gates[:, 2 * H:3 * H])
        og = jax.nn.sigmoid(gates[:, 3 * H:4 * H])
        c_i = fg * c_0[i] + ig * gg
        h_i = og * jnp.tanh(c_i)
        x = h_i
        hs.append(h_i)
        cs.append(c_i)
    return x, (jnp.stack(hs), jnp.stack(cs))


if __name__ == "__main__":
    num_layers = 2
    batch = 8
    input_size = 32
    rnn_size = 32

    key = jax.random.PRNGKey(0)
    key, kx, kh, kc, kw = jax.random.split(key, 5)

    x = jax.random.normal(kx, (batch, input_size), jnp.float32)
    h_0 = jax.random.normal(kh, (num_layers, batch, rnn_size), jnp.float32)
    c_0 = jax.random.normal(kc, (num_layers, batch, rnn_size), jnp.float32)

    model = StackedLSTMCellPallas(num_layers, input_size, rnn_size, dropout=0.5, key=kw)

    out, (hs, cs) = model(x, (h_0, c_0))
    jax.block_until_ready((out, hs, cs))

    ref_out, (ref_hs, ref_cs) = _reference_forward(model, x, (h_0, c_0))
    assert out.shape == (batch, rnn_size)
    assert hs.shape == (num_layers, batch, rnn_size)
    assert cs.shape == (num_layers, batch, rnn_size)
    assert jnp.allclose(out, ref_out, atol=1e-5)
    assert jnp.allclose(hs, ref_hs, atol=1e-5)
    assert jnp.allclose(cs, ref_cs, atol=1e-5)

    print("KERNEL_OK")
</pallas_src>

<mosaic_0001>
module attributes {stable_mosaic.version = 11 : i64} {
  func.func @_stacked_lstm_kernel(%arg0: memref<8x32xf32, #tpu.memory_space<vmem>>, %arg1: memref<2x8x32xf32, #tpu.memory_space<vmem>>, %arg2: memref<2x8x32xf32, #tpu.memory_space<vmem>>, %arg3: memref<2x32x128xf32, #tpu.memory_space<vmem>>, %arg4: memref<2x32x128xf32, #tpu.memory_space<vmem>>, %arg5: memref<8x128xf32, #tpu.memory_space<vmem>>) attributes {dimension_semantics = [], scalar_prefetch = 0 : i64, scratch_operands = 0 : i64, tpu.core_type = #tpu.core_type<tc>} {
    %c0 = arith.constant 0 : index
    %c0_0 = arith.constant 0 : index
    %0 = vector.load %arg0[%c0, %c0_0] : memref<8x32xf32, #tpu.memory_space<vmem>>, vector<8x32xf32>
    %c0_1 = arith.constant 0 : index
    %c0_2 = arith.constant 0 : index
    %c0_3 = arith.constant 0 : index
    %1 = vector.load %arg3[%c0_1, %c0_2, %c0_3] : memref<2x32x128xf32, #tpu.memory_space<vmem>>, vector<1x32x128xf32>
    %2 = vector.shape_cast %1 : vector<1x32x128xf32> to vector<32x128xf32>
    %cst = arith.constant dense<0.000000e+00> : vector<8x128xf32>
    %3 = tpu.matmul %0, %2, %cst {dimension_numbers = #tpu.dot_dimension_numbers<[1], [0], [0], [1], [0, 0, 1, 1], [], []>} : vector<8x32xf32>, vector<32x128xf32>, vector<8x128xf32> -> vector<8x128xf32>
    %c0_4 = arith.constant 0 : index
    %c0_5 = arith.constant 0 : index
    %c0_6 = arith.constant 0 : index
    %4 = vector.load %arg1[%c0_4, %c0_5, %c0_6] : memref<2x8x32xf32, #tpu.memory_space<vmem>>, vector<1x8x32xf32>
    %5 = vector.shape_cast %4 : vector<1x8x32xf32> to vector<8x32xf32>
    %c0_7 = arith.constant 0 : index
    %c0_8 = arith.constant 0 : index
    %c0_9 = arith.constant 0 : index
    %6 = vector.load %arg4[%c0_7, %c0_8, %c0_9] : memref<2x32x128xf32, #tpu.memory_space<vmem>>, vector<1x32x128xf32>
    %7 = vector.shape_cast %6 : vector<1x32x128xf32> to vector<32x128xf32>
    %cst_10 = arith.constant dense<0.000000e+00> : vector<8x128xf32>
    %8 = tpu.matmul %5, %7, %cst_10 {dimension_numbers = #tpu.dot_dimension_numbers<[1], [0], [0], [1], [0, 0, 1, 1], [], []>} : vector<8x32xf32>, vector<32x128xf32>, vector<8x128xf32> -> vector<8x128xf32>
    %9 = arith.addf %3, %8 : vector<8x128xf32>
    %10 = arith.negf %9 : vector<8x128xf32>
    %11 = math.exp %10 : vector<8x128xf32>
    %cst_11 = arith.constant 1.000000e+00 : f32
    %12 = vector.broadcast %cst_11 : f32 to vector<8x128xf32>
    %13 = arith.addf %12, %11 : vector<8x128xf32>
    %14 = arith.divf %12, %13 : vector<8x128xf32>
    %15 = math.tanh %9 : vector<8x128xf32>
    %16 = vector.extract_strided_slice %14 {offsets = [0, 0], sizes = [8, 32], strides = [1, 1]} : vector<8x128xf32> to vector<8x32xf32>
    %17 = vector.extract_strided_slice %14 {offsets = [0, 32], sizes = [8, 32], strides = [1, 1]} : vector<8x128xf32> to vector<8x32xf32>
    %18 = vector.extract_strided_slice %15 {offsets = [0, 64], sizes = [8, 32], strides = [1, 1]} : vector<8x128xf32> to vector<8x32xf32>
    %19 = vector.extract_strided_slice %14 {offsets = [0, 96], sizes = [8, 32], strides = [1, 1]} : vector<8x128xf32> to vector<8x32xf32>
    %c0_12 = arith.constant 0 : index
    %c0_13 = arith.constant 0 : index
    %c0_14 = arith.constant 0 : index
    %20 = vector.load %arg2[%c0_12, %c0_13, %c0_14] : memref<2x8x32xf32, #tpu.memory_space<vmem>>, vector<1x8x32xf32>
    %21 = vector.shape_cast %20 : vector<1x8x32xf32> to vector<8x32xf32>
    %22 = arith.mulf %17, %21 : vector<8x32xf32>
    %23 = arith.mulf %16, %18 : vector<8x32xf32>
    %24 = arith.addf %22, %23 : vector<8x32xf32>
    %25 = math.tanh %24 : vector<8x32xf32>
    %26 = arith.mulf %19, %25 : vector<8x32xf32>
    %c1 = arith.constant 1 : index
    %c0_15 = arith.constant 0 : index
    %c0_16 = arith.constant 0 : index
    %27 = vector.load %arg3[%c1, %c0_15, %c0_16] : memref<2x32x128xf32, #tpu.memory_space<vmem>>, vector<1x32x128xf32>
    %28 = vector.shape_cast %27 : vector<1x32x128xf32> to vector<32x128xf32>
    %cst_17 = arith.constant dense<0.000000e+00> : vector<8x128xf32>
    %29 = tpu.matmul %26, %28, %cst_17 {dimension_numbers = #tpu.dot_dimension_numbers<[1], [0], [0], [1], [0, 0, 1, 1], [], []>} : vector<8x32xf32>, vector<32x128xf32>, vector<8x128xf32> -> vector<8x128xf32>
    %c1_18 = arith.constant 1 : index
    %c0_19 = arith.constant 0 : index
    %c0_20 = arith.constant 0 : index
    %30 = vector.load %arg1[%c1_18, %c0_19, %c0_20] : memref<2x8x32xf32, #tpu.memory_space<vmem>>, vector<1x8x32xf32>
    %31 = vector.shape_cast %30 : vector<1x8x32xf32> to vector<8x32xf32>
    %c1_21 = arith.constant 1 : index
    %c0_22 = arith.constant 0 : index
    %c0_23 = arith.constant 0 : index
    %32 = vector.load %arg4[%c1_21, %c0_22, %c0_23] : memref<2x32x128xf32, #tpu.memory_space<vmem>>, vector<1x32x128xf32>
    %33 = vector.shape_cast %32 : vector<1x32x128xf32> to vector<32x128xf32>
    %cst_24 = arith.constant dense<0.000000e+00> : vector<8x128xf32>
    %34 = tpu.matmul %31, %33, %cst_24 {dimension_numbers = #tpu.dot_dimension_numbers<[1], [0], [0], [1], [0, 0, 1, 1], [], []>} : vector<8x32xf32>, vector<32x128xf32>, vector<8x128xf32> -> vector<8x128xf32>
    %35 = arith.addf %29, %34 : vector<8x128xf32>
    %36 = arith.negf %35 : vector<8x128xf32>
    %37 = math.exp %36 : vector<8x128xf32>
    %cst_25 = arith.constant 1.000000e+00 : f32
    %38 = vector.broadcast %cst_25 : f32 to vector<8x128xf32>
    %39 = arith.addf %38, %37 : vector<8x128xf32>
    %40 = arith.divf %38, %39 : vector<8x128xf32>
    %41 = math.tanh %35 : vector<8x128xf32>
    %42 = vector.extract_strided_slice %40 {offsets = [0, 0], sizes = [8, 32], strides = [1, 1]} : vector<8x128xf32> to vector<8x32xf32>
    %43 = vector.extract_strided_slice %40 {offsets = [0, 32], sizes = [8, 32], strides = [1, 1]} : vector<8x128xf32> to vector<8x32xf32>
    %44 = vector.extract_strided_slice %41 {offsets = [0, 64], sizes = [8, 32], strides = [1, 1]} : vector<8x128xf32> to vector<8x32xf32>
    %45 = vector.extract_strided_slice %40 {offsets = [0, 96], sizes = [8, 32], strides = [1, 1]} : vector<8x128xf32> to vector<8x32xf32>
    %c1_26 = arith.constant 1 : index
    %c0_27 = arith.constant 0 : index
    %c0_28 = arith.constant 0 : index
    %46 = vector.load %arg2[%c1_26, %c0_27, %c0_28] : memref<2x8x32xf32, #tpu.memory_space<vmem>>, vector<1x8x32xf32>
    %47 = vector.shape_cast %46 : vector<1x8x32xf32> to vector<8x32xf32>
    %48 = arith.mulf %43, %47 : vector<8x32xf32>
    %49 = arith.mulf %42, %44 : vector<8x32xf32>
    %50 = arith.addf %48, %49 : vector<8x32xf32>
    %51 = math.tanh %50 : vector<8x32xf32>
    %52 = arith.mulf %45, %51 : vector<8x32xf32>
    %53 = tpu.concatenate %26, %52, %24, %50 in 1 : vector<8x32xf32>, vector<8x32xf32>, vector<8x32xf32>, vector<8x32xf32> -> vector<8x128xf32>
    %c0_29 = arith.constant 0 : index
    %c0_30 = arith.constant 0 : index
    %54 = vector.load %arg5[%c0_29, %c0_30] : memref<8x128xf32, #tpu.memory_space<vmem>>, vector<8x128xf32>
    tpu.vector_store %arg5[%c0_29, %c0_30], %53 {strides = array<i32>} : memref<8x128xf32, #tpu.memory_space<vmem>>, vector<8x128xf32>,
    return
  }
}

</mosaic_0001>

<llo_original>
// kernel: _stacked_lstm_forward.1
$region0: #{_stacked_lstm_forward.1}
  #allocation0 [shape = 'u32[]', space=smem, size = 0x4, offset = 0x4, fixed_abs, tag = 'smem constant byte address 0x4 - core index']
  #allocation1 [shape = 'u32[144,128]{1,0:T(1,128)}', space=vmem, size = 0x12000, scoped, tag = 'internal scratch']
  %s0 = inlined_call_operand.hbm [shape: f32[8,32], index: 0, kind: input, shape index: {}]
  %s1 = inlined_call_operand.hbm [shape: f32[2,8,32], index: 1, kind: input, shape index: {}]
  %s2 = inlined_call_operand.hbm [shape: f32[2,8,32], index: 2, kind: input, shape index: {}]
  %s3 = inlined_call_operand.hbm [shape: f32[2,32,128], index: 3, kind: input, shape index: {}]
  %s4 = inlined_call_operand.hbm [shape: f32[2,32,128], index: 4, kind: input, shape index: {}]
  %s5 = inlined_call_operand.vmem [shape: f32[8,128], index: 5, kind: output, shape index: {}]
  %s6 = sld [smem:[#allocation0]]
  $region50: #{_stacked_lstm_forward.1} parent=0
    _
  %s8 = ssub.s32 1, %s6
  %s9 = scalar_select 0, %s8, %s6
  $region1: #{_stacked_lstm_forward.1} parent=0
    #allocation2 [shape = 'u8[4096]{0}', space=vmem, size = 0x1000, scoped, tag = 'input window, operand 0, single buffered']
    #allocation3 [shape = 's32[1]{0}', space=sflag, size = 0x4, scoped, tag = 'scoped memory for _stacked_lstm_forward.1']
    #allocation4 [shape = 'u8[8192]{0}', space=vmem, size = 0x2000, scoped, tag = 'input window, operand 1, single buffered']
    #allocation5 [shape = 's32[1]{0}', space=sflag, size = 0x4, scoped, tag = 'scoped memory for _stacked_lstm_forward.1']
    #allocation6 [shape = 'u8[8192]{0}', space=vmem, size = 0x2000, scoped, tag = 'input window, operand 2, single buffered']
    #allocation7 [shape = 'u8[32768]{0}', space=vmem, size = 0x8000, scoped, tag = 'input window, operand 3, single buffered']
    #allocation8 [shape = 's32[1]{0}', space=sflag, size = 0x4, scoped, tag = 'scoped memory for _stacked_lstm_forward.1']
    #allocation9 [shape = 'u8[32768]{0}', space=vmem, size = 0x8000, scoped, tag = 'input window, operand 4, single buffered']
    %10 = vsyncpa [#allocation3], 0
    %11 = vsyncpa [#allocation5], 0
    %12 = vsyncpa [#allocation8], 0
    // Predicated region
    $region2: #{_stacked_lstm_forward.1} parent=1 // pred_check
      _
    $region3: #{_stacked_lstm_forward.1} parent=1 // pred_check_branch
      %14 = sbr.rel (0) target = $region5
    $region4: #{_stacked_lstm_forward.1} parent=1 // pred_region
      %s16 = ssub.s32 128, 128
      %17 = vsyncadd [#allocation3], %s16
      %s19 = sshll.u32 [#allocation2], 4
      %s20 = int_to_ptr.vmem [resolvable:$true] %s19
      %22 = dma.hbm_to_vmem [thread:$0]  %s0, 128, %s20, [#allocation3]
    $region5: #{_stacked_lstm_forward.1} parent=1 // pred_fallthru
      _
    // Predicated region
    $region6: #{_stacked_lstm_forward.1} parent=1 // pred_check
      _
    $region7: #{_stacked_lstm_forward.1} parent=1 // pred_check_branch
      %24 = sbr.rel (0) target = $region9
    $region8: #{_stacked_lstm_forward.1} parent=1 // pred_region
      %s26 = ssub.s32 256, 256
      %27 = vsyncadd [#allocation5], %s26
      %s28 = sshll.u32 [#allocation4], 4
      %s29 = int_to_ptr.vmem [resolvable:$true] %s28
      %34 = dma.hbm_to_vmem [thread:$0]  %s1, 256, %s29, [#allocation5], 128, 128, 8
    $region9: #{_stacked_lstm_forward.1} parent=1 // pred_fallthru
      _
    // Predicated region
    $region10: #{_stacked_lstm_forward.1} parent=1 // pred_check
      _
    $region11: #{_stacked_lstm_forward.1} parent=1 // pred_check_branch
      %36 = sbr.rel (0) target = $region13
    $region12: #{_stacked_lstm_forward.1} parent=1 // pred_region
      %s38 = ssub.s32 256, 256
      %39 = vsyncadd [#allocation5], %s38
      %s40 = sshll.u32 [#allocation6], 4
      %s41 = int_to_ptr.vmem [resolvable:$true] %s40
      %46 = dma.hbm_to_vmem [thread:$0]  %s2, 256, %s41, [#allocation5], 128, 128, 8
    $region13: #{_stacked_lstm_forward.1} parent=1 // pred_fallthru
      _
    // Predicated region
    $region14: #{_stacked_lstm_forward.1} parent=1 // pred_check
      _
    $region15: #{_stacked_lstm_forward.1} parent=1 // pred_check_branch
      %48 = sbr.rel (0) target = $region17
    $region16: #{_stacked_lstm_forward.1} parent=1 // pred_region
      %s50 = ssub.s32 1024, 1024
      %51 = vsyncadd [#allocation8], %s50
      %s52 = sshll.u32 [#allocation7], 4
      %s53 = int_to_ptr.vmem [resolvable:$true] %s52
      %58 = dma.hbm_to_vmem [thread:$0]  %s3, 1024, %s53, [#allocation8], 128, 128, 8
    $region17: #{_stacked_lstm_forward.1} parent=1 // pred_fallthru
      _
    // Predicated region
    $region18: #{_stacked_lstm_forward.1} parent=1 // pred_check
      _
    $region19: #{_stacked_lstm_forward.1} parent=1 // pred_check_branch
      %60 = sbr.rel (0) target = $region21
    $region20: #{_stacked_lstm_forward.1} parent=1 // pred_region
      %s62 = ssub.s32 1024, 1024
      %63 = vsyncadd [#allocation8], %s62
      %s64 = sshll.u32 [#allocation9], 4
      %s65 = int_to_ptr.vmem [resolvable:$true] %s64
      %70 = dma.hbm_to_vmem [thread:$0]  %s4, 1024, %s65, [#allocation8], 128, 128, 8
    $region21: #{_stacked_lstm_forward.1} parent=1 // pred_fallthru
      _
    // Predicated region
    $region22: #{_stacked_lstm_forward.1} parent=1 // pred_check
      _
    $region23: #{_stacked_lstm_forward.1} parent=1 // pred_check_branch
      %72 = sbr.rel (0) target = $region25
    $region24: #{_stacked_lstm_forward.1} parent=1 // pred_region
      %73 = dma.done [#allocation3], 128
    $region25: #{_stacked_lstm_forward.1} parent=1 // pred_fallthru
      _
    // Predicated region
    $region26: #{_stacked_lstm_forward.1} parent=1 // pred_check
      _
    $region27: #{_stacked_lstm_forward.1} parent=1 // pred_check_branch
      %75 = sbr.rel (0) target = $region29
    $region28: #{_stacked_lstm_forward.1} parent=1 // pred_region
      %76 = dma.done [#allocation5], 256
    $region29: #{_stacked_lstm_forward.1} parent=1 // pred_fallthru
      _
    // Predicated region
    $region30: #{_stacked_lstm_forward.1} parent=1 // pred_check
      _
    $region31: #{_stacked_lstm_forward.1} parent=1 // pred_check_branch
      %78 = sbr.rel (0) target = $region33
    $region32: #{_stacked_lstm_forward.1} parent=1 // pred_region
      %79 = dma.done [#allocation5], 256
    $region33: #{_stacked_lstm_forward.1} parent=1 // pred_fallthru
      _
    // Predicated region
    $region34: #{_stacked_lstm_forward.1} parent=1 // pred_check
      _
    $region35: #{_stacked_lstm_forward.1} parent=1 // pred_check_branch
      %81 = sbr.rel (0) target = $region37
    $region36: #{_stacked_lstm_forward.1} parent=1 // pred_region
      %82 = dma.done [#allocation8], 1024
    $region37: #{_stacked_lstm_forward.1} parent=1 // pred_fallthru
      _
    // Predicated region
    $region38: #{_stacked_lstm_forward.1} parent=1 // pred_check
      _
    $region39: #{_stacked_lstm_forward.1} parent=1 // pred_check_branch
      %84 = sbr.rel (0) target = $region41
    $region40: #{_stacked_lstm_forward.1} parent=1 // pred_region
      %85 = dma.done [#allocation8], 1024
    $region41: #{_stacked_lstm_forward.1} parent=1 // pred_fallthru
      _
    %v86 = vld [vmem:[#allocation2] sm:$0xff]
    %v87 = vld [vmem:[#allocation7] sm:$0xff]
    %v88 = vld [vmem:[#allocation7 + $0x8] sm:$0xff]
    %v89 = vld [vmem:[#allocation7 + $0x10] sm:$0xff]
    %v90 = vld [vmem:[#allocation7 + $0x18] sm:$0xff]
    %v91 = vld [vmem:[#allocation4] sm:$0xff]
    %v92 = vld [vmem:[#allocation9] sm:$0xff]
    %v93 = vld [vmem:[#allocation9 + $0x8] sm:$0xff]
    %v94 = vld [vmem:[#allocation9 + $0x10] sm:$0xff]
    %v95 = vld [vmem:[#allocation9 + $0x18] sm:$0xff]
    %vm96 = vcmask 261120
    %v98 = vsel %vm96, %v91, 0
    %100 = vmatprep.subr.mxu0 0.0
    %101 = vmatpush1.msra.mxu0 %v92
    %102 = vmatprep.subr.mxu0 0.0
    %103 = vmatpush1.msra.mxu0 %v93
    %104 = vmatprep.subr.mxu0 0.0
    %105 = vmatpush1.msra.mxu0 %v94
    %106 = vmatprep.subr.mxu0 0.0
    %107 = vmatpush1.msra.mxu0 %v95
    %108 = vmatprep.subr.mxu0 0.0
    %109 = vmatpush1.msra.mxu0 0.0
    %110 = vmatprep.subr.mxu0 0.0
    %111 = vmatpush1.msra.mxu0 0.0
    %112 = vmatprep.subr.mxu0 0.0
    %113 = vmatpush1.msra.mxu0 0.0
    %114 = vmatprep.subr.mxu0 0.0
    %115 = vmatpush1.msra.mxu0 0.0
    %116 = vmatprep.subr.mxu0 0.0
    %117 = vmatpush1.msra.mxu0 0.0
    %118 = vmatprep.subr.mxu0 0.0
    %119 = vmatpush1.msra.mxu0 0.0
    %120 = vmatprep.subr.mxu0 0.0
    %121 = vmatpush1.msra.mxu0 0.0
    %122 = vmatprep.subr.mxu0 0.0
    %123 = vmatpush1.msra.mxu0 0.0
    %124 = vmatprep.subr.mxu0 0.0
    %125 = vmatpush1.msra.mxu0 0.0
    %126 = vmatprep.subr.mxu0 0.0
    %127 = vmatpush1.msra.mxu0 0.0
    %128 = vmatprep.subr.mxu0 0.0
    %129 = vmatpush1.msra.mxu0 0.0
    %130 = vmatprep.subr.mxu0 0.0
    %131 = vmatpush1.msra.mxu0 0.0
    %132 = vmatprep.subr.mxu0 0.0
    %133 = vmatpush1.msra.mxu0 0.0
    %134 = vmatprep.subr.mxu0 0.0
    %135 = vmatpush1.msra.mxu0 0.0
    %136 = vmatprep.subr.mxu0 0.0
    %137 = vmatpush1.msra.mxu0 0.0
    %138 = vmatprep.subr.mxu0 0.0
    %139 = vmatpush1.msra.mxu0 0.0
    %140 = vmatprep.subr.mxu0 0.0
    %141 = vmatpush1.msra.mxu0 0.0
    %142 = vmatprep.subr.mxu0 0.0
    %143 = vmatpush1.msra.mxu0 0.0
    %144 = vmatprep.subr.mxu0 0.0
    %145 = vmatpush1.msra.mxu0 0.0
    %146 = vmatprep.subr.mxu0 0.0
    %147 = vmatpush1.msra.mxu0 0.0
    %148 = vmatprep.subr.mxu0 0.0
    %149 = vmatpush1.msra.mxu0 0.0
    %150 = vmatprep.subr.mxu0 0.0
    %151 = vmatpush1.msra.mxu0 0.0
    %152 = vmatprep.subr.mxu0 0.0
    %153 = vmatpush1.msra.mxu0 0.0
    %154 = vmatprep.subr.mxu0 0.0
    %155 = vmatpush1.msra.mxu0 0.0
    %156 = vmatprep.subr.mxu0 0.0
    %157 = vmatpush1.msra.mxu0 0.0
    %158 = vmatprep.subr.mxu0 0.0
    %159 = vmatpush1.msra.mxu0 0.0
    %160 = vmatprep.subr.mxu0 0.0
    %161 = vmatpush1.msra.mxu0 0.0
    %162 = vmatprep.subr.mxu0 0.0
    %163 = vmatpush1.msra.mxu0 0.0
    %164 = vmatprep.mubr.f32.mxu0 0.0
    %165 = vmatmul.mubr.f32.gmra.mrb[0].mxu0 %v98
    %v166 = vpop.f32.mrb[0].mxu0
    %v167 = vadd.f32 0.0, %v166
    %v168 = vpop.f32.mrb[0].mxu0
    %169 = vdwg.mxu0
    %v171 = vsel %vm96, %v86, 0
    %173 = vmatprep.subr.mxu0 0.0
    %174 = vmatpush1.msra.mxu0 %v87
    %175 = vmatprep.subr.mxu0 0.0
    %176 = vmatpush1.msra.mxu0 %v88
    %177 = vmatprep.subr.mxu0 0.0
    %178 = vmatpush1.msra.mxu0 %v89
    %179 = vmatprep.subr.mxu0 0.0
    %180 = vmatpush1.msra.mxu0 %v90
    %181 = vmatprep.subr.mxu0 0.0
    %182 = vmatpush1.msra.mxu0 0.0
    %183 = vmatprep.subr.mxu0 0.0
    %184 = vmatpush1.msra.mxu0 0.0
    %185 = vmatprep.subr.mxu0 0.0
    %186 = vmatpush1.msra.mxu0 0.0
    %187 = vmatprep.subr.mxu0 0.0
    %188 = vmatpush1.msra.mxu0 0.0
    %189 = vmatprep.subr.mxu0 0.0
    %190 = vmatpush1.msra.mxu0 0.0
    %191 = vmatprep.subr.mxu0 0.0
    %192 = vmatpush1.msra.mxu0 0.0
    %193 = vmatprep.subr.mxu0 0.0
    %194 = vmatpush1.msra.mxu0 0.0
    %195 = vmatprep.subr.mxu0 0.0
    %196 = vmatpush1.msra.mxu0 0.0
    %197 = vmatprep.subr.mxu0 0.0
    %198 = vmatpush1.msra.mxu0 0.0
    %199 = vmatprep.subr.mxu0 0.0
    %200 = vmatpush1.msra.mxu0 0.0
    %201 = vmatprep.subr.mxu0 0.0
    %202 = vmatpush1.msra.mxu0 0.0
    %203 = vmatprep.subr.mxu0 0.0
    %204 = vmatpush1.msra.mxu0 0.0
    %205 = vmatprep.subr.mxu0 0.0
    %206 = vmatpush1.msra.mxu0 0.0
    %207 = vmatprep.subr.mxu0 0.0
    %208 = vmatpush1.msra.mxu0 0.0
    %209 = vmatprep.subr.mxu0 0.0
    %210 = vmatpush1.msra.mxu0 0.0
    %211 = vmatprep.subr.mxu0 0.0
    %212 = vmatpush1.msra.mxu0 0.0
    %213 = vmatprep.subr.mxu0 0.0
    %214 = vmatpush1.msra.mxu0 0.0
    %215 = vmatprep.subr.mxu0 0.0
    %216 = vmatpush1.msra.mxu0 0.0
    %217 = vmatprep.subr.mxu0 0.0
    %218 = vmatpush1.msra.mxu0 0.0
    %219 = vmatprep.subr.mxu0 0.0
    %220 = vmatpush1.msra.mxu0 0.0
    %221 = vmatprep.subr.mxu0 0.0
    %222 = vmatpush1.msra.mxu0 0.0
    %223 = vmatprep.subr.mxu0 0.0
    %224 = vmatpush1.msra.mxu0 0.0
    %225 = vmatprep.subr.mxu0 0.0
    %226 = vmatpush1.msra.mxu0 0.0
    %227 = vmatprep.subr.mxu0 0.0
    %228 = vmatpush1.msra.mxu0 0.0
    %229 = vmatprep.subr.mxu0 0.0
    %230 = vmatpush1.msra.mxu0 0.0
    %231 = vmatprep.subr.mxu0 0.0
    %232 = vmatpush1.msra.mxu0 0.0
    %233 = vmatprep.subr.mxu0 0.0
    %234 = vmatpush1.msra.mxu0 0.0
    %235 = vmatprep.subr.mxu0 0.0
    %236 = vmatpush1.msra.mxu0 0.0
    %237 = vmatprep.mubr.f32.mxu0 0.0
    %238 = vmatmul.mubr.f32.gmra.mrb[0].mxu0 %v171
    %v239 = vpop.f32.mrb[0].mxu0
    %v240 = vadd.f32 %v167, %v239
    %v241 = vpop.f32.mrb[0].mxu0
    %242 = vdwg.mxu0
    %v243 = vxor.u32 %v240, 2147483648
    %v244 = vmul.f32 %v243, 1.442695
    %v245 = vpow.pop %v244
    %v246 = vadd.f32 %v245, 1.0
    %v247 = vrcp.pop %v246
    %v248 = vmul.f32 1.0, %v247
    %v249 = vtanh.pop %v240
    %v250 = vld [vmem:[#allocation6] sm:$0xff]
    %252 = vrot.lane.b32.xlu0 %v250, 32
    %v253 = vpop.permute.xlu0 %252
    %v255 = vmul.f32 %v248, %v253
    %257 = vrot.lane.b32.xlu0 %v249, 64
    %v258 = vpop.permute.xlu0 %257
    %v260 = vmul.f32 %v248, %v258
    %262 = vrot.lane.b32.xlu0 %v260, 32
    %v263 = vpop.permute.xlu0 %262
    %v265 = vadd.f32 %v255, %v263
    %v266 = vtanh.pop %v265
    %268 = vrot.lane.b32.xlu0 %v266, 64
    %v269 = vpop.permute.xlu0 %268
    %v271 = vmul.f32 %v248, %v269
    %s272 = scalar_lea.vmem [#allocation7], 32
    %v273 = vld [vmem:[%s272] sm:$0xff]
    %v274 = vld [vmem:[%s272 + $0x8] sm:$0xff]
    %v275 = vld [vmem:[%s272 + $0x10] sm:$0xff]
    %v276 = vld [vmem:[%s272 + $0x18] sm:$0xff]
    %s277 = scalar_lea.vmem [#allocation4], 8
    %v278 = vld [vmem:[%s277] sm:$0xff]
    %s279 = scalar_lea.vmem [#allocation9], 32
    %v280 = vld [vmem:[%s279] sm:$0xff]
    %v281 = vld [vmem:[%s279 + $0x8] sm:$0xff]
    %v282 = vld [vmem:[%s279 + $0x10] sm:$0xff]
    %v283 = vld [vmem:[%s279 + $0x18] sm:$0xff]
    %v285 = vsel %vm96, %v278, 0
    %287 = vmatprep.subr.mxu0 0.0
    %288 = vmatpush1.msra.mxu0 %v280
    %289 = vmatprep.subr.mxu0 0.0
    %290 = vmatpush1.msra.mxu0 %v281
    %291 = vmatprep.subr.mxu0 0.0
    %292 = vmatpush1.msra.mxu0 %v282
    %293 = vmatprep.subr.mxu0 0.0
    %294 = vmatpush1.msra.mxu0 %v283
    %295 = vmatprep.subr.mxu0 0.0
    %296 = vmatpush1.msra.mxu0 0.0
    %297 = vmatprep.subr.mxu0 0.0
    %298 = vmatpush1.msra.mxu0 0.0
    %299 = vmatprep.subr.mxu0 0.0
    %300 = vmatpush1.msra.mxu0 0.0
    %301 = vmatprep.subr.mxu0 0.0
    %302 = vmatpush1.msra.mxu0 0.0
    %303 = vmatprep.subr.mxu0 0.0
    %304 = vmatpush1.msra.mxu0 0.0
    %305 = vmatprep.subr.mxu0 0.0
    %306 = vmatpush1.msra.mxu0 0.0
    %307 = vmatprep.subr.mxu0 0.0
    %308 = vmatpush1.msra.mxu0 0.0
    %309 = vmatprep.subr.mxu0 0.0
    %310 = vmatpush1.msra.mxu0 0.0
    %311 = vmatprep.subr.mxu0 0.0
    %312 = vmatpush1.msra.mxu0 0.0
    %313 = vmatprep.subr.mxu0 0.0
    %314 = vmatpush1.msra.mxu0 0.0
    %315 = vmatprep.subr.mxu0 0.0
    %316 = vmatpush1.msra.mxu0 0.0
    %317 = vmatprep.subr.mxu0 0.0
    %318 = vmatpush1.msra.mxu0 0.0
    %319 = vmatprep.subr.mxu0 0.0
    %320 = vmatpush1.msra.mxu0 0.0
    %321 = vmatprep.subr.mxu0 0.0
    %322 = vmatpush1.msra.mxu0 0.0
    %323 = vmatprep.subr.mxu0 0.0
    %324 = vmatpush1.msra.mxu0 0.0
    %325 = vmatprep.subr.mxu0 0.0
    %326 = vmatpush1.msra.mxu0 0.0
    %327 = vmatprep.subr.mxu0 0.0
    %328 = vmatpush1.msra.mxu0 0.0
    %329 = vmatprep.subr.mxu0 0.0
    %330 = vmatpush1.msra.mxu0 0.0
    %331 = vmatprep.subr.mxu0 0.0
    %332 = vmatpush1.msra.mxu0 0.0
    %333 = vmatprep.subr.mxu0 0.0
    %334 = vmatpush1.msra.mxu0 0.0
    %335 = vmatprep.subr.mxu0 0.0
    %336 = vmatpush1.msra.mxu0 0.0
    %337 = vmatprep.subr.mxu0 0.0
    %338 = vmatpush1.msra.mxu0 0.0
    %339 = vmatprep.subr.mxu0 0.0
    %340 = vmatpush1.msra.mxu0 0.0
    %341 = vmatprep.subr.mxu0 0.0
    %342 = vmatpush1.msra.mxu0 0.0
    %343 = vmatprep.subr.mxu0 0.0
    %344 = vmatpush1.msra.mxu0 0.0
    %345 = vmatprep.subr.mxu0 0.0
    %346 = vmatpush1.msra.mxu0 0.0
    %347 = vmatprep.subr.mxu0 0.0
    %348 = vmatpush1.msra.mxu0 0.0
    %349 = vmatprep.subr.mxu0 0.0
    %350 = vmatpush1.msra.mxu0 0.0
    %351 = vmatprep.mubr.f32.mxu0 0.0
    %352 = vmatmul.mubr.f32.gmra.mrb[0].mxu0 %v285
    %v353 = vpop.f32.mrb[0].mxu0
    %v354 = vadd.f32 0.0, %v353
    %v355 = vpop.f32.mrb[0].mxu0
    %356 = vdwg.mxu0
    %358 = vrot.lane.b32.xlu0 %v271, 32
    %v359 = vpop.permute.xlu0 %358
    %v360 = vsel %vm96, %v359, 0
    %362 = vmatprep.subr.mxu0 0.0
    %363 = vmatpush1.msra.mxu0 %v273
    %364 = vmatprep.subr.mxu0 0.0
    %365 = vmatpush1.msra.mxu0 %v274
    %366 = vmatprep.subr.mxu0 0.0
    %367 = vmatpush1.msra.mxu0 %v275
    %368 = vmatprep.subr.mxu0 0.0
    %369 = vmatpush1.msra.mxu0 %v276
    %370 = vmatprep.subr.mxu0 0.0
    %371 = vmatpush1.msra.mxu0 0.0
    %372 = vmatprep.subr.mxu0 0.0
    %373 = vmatpush1.msra.mxu0 0.0
    %374 = vmatprep.subr.mxu0 0.0
    %375 = vmatpush1.msra.mxu0 0.0
    %376 = vmatprep.subr.mxu0 0.0
    %377 = vmatpush1.msra.mxu0 0.0
    %378 = vmatprep.subr.mxu0 0.0
    %379 = vmatpush1.msra.mxu0 0.0
    %380 = vmatprep.subr.mxu0 0.0
    %381 = vmatpush1.msra.mxu0 0.0
    %382 = vmatprep.subr.mxu0 0.0
    %383 = vmatpush1.msra.mxu0 0.0
    %384 = vmatprep.subr.mxu0 0.0
    %385 = vmatpush1.msra.mxu0 0.0
    %386 = vmatprep.subr.mxu0 0.0
    %387 = vmatpush1.msra.mxu0 0.0
    %388 = vmatprep.subr.mxu0 0.0
    %389 = vmatpush1.msra.mxu0 0.0
    %390 = vmatprep.subr.mxu0 0.0
    %391 = vmatpush1.msra.mxu0 0.0
    %392 = vmatprep.subr.mxu0 0.0
    %393 = vmatpush1.msra.mxu0 0.0
    %394 = vmatprep.subr.mxu0 0.0
    %395 = vmatpush1.msra.mxu0 0.0
    %396 = vmatprep.subr.mxu0 0.0
    %397 = vmatpush1.msra.mxu0 0.0
    %398 = vmatprep.subr.mxu0 0.0
    %399 = vmatpush1.msra.mxu0 0.0
    %400 = vmatprep.subr.mxu0 0.0
    %401 = vmatpush1.msra.mxu0 0.0
    %402 = vmatprep.subr.mxu0 0.0
    %403 = vmatpush1.msra.mxu0 0.0
    %404 = vmatprep.subr.mxu0 0.0
    %405 = vmatpush1.msra.mxu0 0.0
    %406 = vmatprep.subr.mxu0 0.0
    %407 = vmatpush1.msra.mxu0 0.0
    %408 = vmatprep.subr.mxu0 0.0
    %409 = vmatpush1.msra.mxu0 0.0
    %410 = vmatprep.subr.mxu0 0.0
    %411 = vmatpush1.msra.mxu0 0.0
    %412 = vmatprep.subr.mxu0 0.0
    %413 = vmatpush1.msra.mxu0 0.0
    %414 = vmatprep.subr.mxu0 0.0
    %415 = vmatpush1.msra.mxu0 0.0
    %416 = vmatprep.subr.mxu0 0.0
    %417 = vmatpush1.msra.mxu0 0.0
    %418 = vmatprep.subr.mxu0 0.0
    %419 = vmatpush1.msra.mxu0 0.0
    %420 = vmatprep.subr.mxu0 0.0
    %421 = vmatpush1.msra.mxu0 0.0
    %422 = vmatprep.subr.mxu0 0.0
    %423 = vmatpush1.msra.mxu0 0.0
    %424 = vmatprep.subr.mxu0 0.0
    %425 = vmatpush1.msra.mxu0 0.0
    %426 = vmatprep.mubr.f32.mxu0 0.0
    %427 = vmatmul.mubr.f32.gmra.mrb[0].mxu0 %v360
    %v428 = vpop.f32.mrb[0].mxu0
    %v429 = vadd.f32 %v354, %v428
    %v430 = vpop.f32.mrb[0].mxu0
    %431 = vdwg.mxu0
    %v432 = vxor.u32 %v429, 2147483648
    %v433 = vmul.f32 %v432, 1.442695
    %v434 = vpow.pop %v433
    %v435 = vadd.f32 %v434, 1.0
    %v436 = vrcp.pop %v435
    %v437 = vmul.f32 1.0, %v436
    %v438 = vtanh.pop %v429
    %s439 = scalar_lea.vmem [#allocation6], 8
    %v440 = vld [vmem:[%s439] sm:$0xff]
    %442 = vrot.lane.b32.xlu0 %v440, 32
    %v443 = vpop.permute.xlu0 %442
    %v445 = vmul.f32 %v437, %v443
    %447 = vrot.lane.b32.xlu0 %v438, 64
    %v448 = vpop.permute.xlu0 %447
    %v450 = vmul.f32 %v437, %v448
    %452 = vrot.lane.b32.xlu0 %v450, 32
    %v453 = vpop.permute.xlu0 %452
    %v455 = vadd.f32 %v445, %v453
    %v456 = vtanh.pop %v455
    %458 = vrot.lane.b32.xlu0 %v456, 64
    %v459 = vpop.permute.xlu0 %458
    %v461 = vmul.f32 %v437, %v459
    %464 = vrot.lane.b32.xlu0 %v461, 64
    %v465 = vpop.permute.xlu0 %464
    %468 = vrot.lane.b32.xlu0 %v265, 32
    %v469 = vpop.permute.xlu0 %468
    %472 = vrot.lane.b32.xlu0 %v455, 64
    %v473 = vpop.permute.xlu0 %472
    %v475 = vsel %vm96, %v359, %v465
    %vm476 = vcmask 523264
    %v477 = vsel %vm476, %v475, %v469
    %vm478 = vcmask 785408
    %v479 = vsel %vm478, %v477, %v473
    %480 = vst [vmem:[%s5] sm:$0xff] %v479
    // Predicated region
    $region42: #{_stacked_lstm_forward.1} parent=1 // pred_check
      _
    $region43: #{_stacked_lstm_forward.1} parent=1 // pred_check_branch
      %482 = sbr.rel (0) target = $region45
    $region44: #{_stacked_lstm_forward.1} parent=1 // pred_region
      _
    $region45: #{_stacked_lstm_forward.1} parent=1 // pred_fallthru
      _
    // Predicated region
    $region46: #{_stacked_lstm_forward.1} parent=1 // pred_check
      _
    $region47: #{_stacked_lstm_forward.1} parent=1 // pred_check_branch
      %484 = sbr.rel (0) target = $region49
    $region48: #{_stacked_lstm_forward.1} parent=1 // pred_region
      _
    $region49: #{_stacked_lstm_forward.1} parent=1 // pred_fallthru
      _
    %485 = vsyncpa [#allocation3], 1
    %486 = vsyncpa [#allocation5], 1
    %487 = vsyncpa [#allocation8], 1

</llo_original>
